<compile_context>
chip_gen: v7x
topology: tpu7x:2x2x1
jax: 0.10.0
libtpu: 0.0.40
codegen_flags: <defaults>
</compile_context>

<pallas_src>
import functools

import jax
import jax.numpy as jnp
import numpy as np
from jax.experimental import pallas as pl
from jax.experimental.pallas import tpu as pltpu


def _round_up(n, m):
    return (n + m - 1) // m * m


def _vmem_capacity_bytes():
    try:
        return int(pltpu.get_tpu_info().vmem_capacity_bytes)
    except Exception:
        return 64 * 1024 * 1024   # conservative fallback (v7x per-core VMEM)


# ----------------------------- Pallas kernel --------------------------------

def _mlp_kernel(x_ref, w1_ref, b1_ref, w2r_ref, b2_ref, *rest,
                compute_loss, masked, n_valid, tb):
    if compute_loss:
        yt_ref, pred_ref, mae_ref, mse_ref = rest
    else:
        (pred_ref,) = rest

    # h1 = relu(x @ W1 + b1)                          [TB, H]   (MXU + VPU)
    h1 = jnp.dot(x_ref[...], w1_ref[...], preferred_element_type=jnp.float32)
    h1 = jnp.maximum(h1 + b1_ref[...], 0.0)

    # pred^T = w2_row @ h1^T + b2                     [1, TB]   lane-dense
    pred_t = jax.lax.dot_general(
        w2r_ref[...], h1,
        dimension_numbers=(((1,), (1,)), ((), ())),
        preferred_element_type=jnp.float32)
    pred_t = pred_t + b2_ref[...]
    pred_ref[...] = pred_t.astype(pred_ref.dtype)

    if compute_loss:
        diff = pred_t - yt_ref[...]
        if masked:   # only compiled in when the batch needed tail padding
            col = (jax.lax.broadcasted_iota(jnp.int32, (1, tb), 1)
                   + pl.program_id(0) * tb)
            diff = jnp.where(col < n_valid, diff, 0.0)
        # Per-grid-step partial sums; wrapper reduces and multiplies by 1/B.
        # (No resident accumulator -> batch axis can be "parallel".)
        mae_ref[...] = jnp.sum(jnp.abs(diff)).reshape(1, 1, 1)
        mse_ref[...] = jnp.sum(diff * diff).reshape(1, 1, 1)


# --------------------------- Tile selection ----------------------------------

def _choose_tile(B, d_in, H, x_itemsize, compute_loss, vmem_budget,
                 max_rows_per_step):
    # Live VMEM bytes per batch row of the tile:
    per_row = 2 * d_in * x_itemsize                  # double-buffered x tile
    per_row += 4 * H                                 # h1 [TB, H] f32 (un-spec'd)
    per_row += 4 * 2 * (2 if compute_loss else 1)    # pred^T (+ y^T), dbl-buf
    # Fixed bytes (weights are double-buffered by the default pipeline):
    fixed = 2 * d_in * H * x_itemsize                # W1
    fixed += 2 * 4 * (2 * H + 1)                     # b1, w2_row, b2
    fixed += 2 << 20                                 # slack for temporaries
    tb_vmem = max((vmem_budget - fixed) // per_row, 128)

    # Target >= ~4 MiB of x per step so per-step pipeline overhead amortizes.
    tb_target = max((4 << 20) // (d_in * x_itemsize), 128)
    tb = int(min(tb_vmem, tb_target))
    if max_rows_per_step is not None:
        tb = min(tb, max(int(max_rows_per_step), 128))
    tb = max(tb // 128 * 128, 128)   # multiple of 128 -> unmasked lane stores

    align = 16 if x_itemsize == 2 else 8             # sublane packing
    b_aligned = _round_up(B, align)
    if b_aligned <= tb:
        tb = b_aligned                               # single step: block == full
        bp = b_aligned
    else:
        bp = _round_up(B, tb)                        # ragged tail only
    return tb, bp


# ------------------------------ Wrapper --------------------------------------

def mlp_regression(x, params, y=None, *, use_bf16=None, max_rows_per_step=None):
    """params = (w1 [D_in,H], b1 [1,H], w2_row [1,H], b2 [1,1])."""
    w1, b1, w2_row, b2 = params
    B, d_in = x.shape
    H = w1.shape[1]
    compute_loss = y is not None

    # bf16 path: free when the producer already supplies bf16 x (no extra HBM
    # pass).  use_bf16=True forces a wrapper-side cast (un-fused extra pass
    # over x in HBM -- only use for testing).
    if use_bf16 is None:
        use_bf16 = x.dtype == jnp.bfloat16
    if use_bf16:
        if x.dtype != jnp.bfloat16:
            x = x.astype(jnp.bfloat16)
        w1 = w1.astype(jnp.bfloat16)

    x_item = jnp.dtype(x.dtype).itemsize
    vmem_budget = min(int(_vmem_capacity_bytes() * 0.7), 100 * 1024 * 1024)
    tb, bp = _choose_tile(B, d_in, H, x_item, compute_loss, vmem_budget,
                          max_rows_per_step)
    grid = (bp // tb,)
    masked = bp != B

    xp = jnp.pad(x, ((0, bp - B), (0, 0))) if masked else x

    kernel = functools.partial(_mlp_kernel, compute_loss=compute_loss,
                               masked=masked, n_valid=B, tb=tb)

    in_specs = [
        pl.BlockSpec((tb, d_in), lambda i: (i, 0)),   # x rows (pipelined)
        pl.BlockSpec((d_in, H), lambda i: (0, 0)),    # W1 (constant index map)
        pl.BlockSpec((1, H), lambda i: (0, 0)),       # b1
        pl.BlockSpec((1, H), lambda i: (0, 0)),       # w2 row
        pl.BlockSpec((1, 1), lambda i: (0, 0)),       # b2
    ]
    inputs = [xp, w1, b1, w2_row, b2]
    pred_spec = pl.BlockSpec((1, tb), lambda i: (0, i))     # lane-dense pred^T
    pred_shape = jax.ShapeDtypeStruct((1, bp), jnp.float32)

    if compute_loss:
        yt = jnp.reshape(y.astype(jnp.float32), (1, B))
        if masked:
            yt = jnp.pad(yt, ((0, 0), (0, bp - B)))
        in_specs.append(pl.BlockSpec((1, tb), lambda i: (0, i)))   # y^T
        inputs.append(yt)
        out_specs = (
            pred_spec,
            pl.BlockSpec((1, 1, 1), lambda i: (i, 0, 0)),   # mae partials
            pl.BlockSpec((1, 1, 1), lambda i: (i, 0, 0)),   # mse partials
        )
        out_shape = (
            pred_shape,
            jax.ShapeDtypeStruct((grid[0], 1, 1), jnp.float32),
            jax.ShapeDtypeStruct((grid[0], 1, 1), jnp.float32),
        )
    else:
        out_specs = pred_spec
        out_shape = pred_shape

    flops = 2 * bp * d_in * H + 2 * bp * H + 2 * bp * H
    bytes_accessed = (bp * d_in * x_item + d_in * H * x_item
                      + 4 * (2 * H + 1) + bp * 4
                      + ((bp * 4 + 2 * grid[0] * 4) if compute_loss else 0))
    cost = pl.CostEstimate(flops=int(flops), transcendentals=0,
                           bytes_accessed=int(bytes_accessed))

    outs = pl.pallas_call(
        kernel,
        grid=grid,
        in_specs=in_specs,
        out_specs=out_specs,
        out_shape=out_shape,
        compiler_params=pltpu.CompilerParams(
            # Per-block loss partials -> no cross-step carry, so the batch
            # axis can be sharded across TensorCores (v7x megacore).
            dimension_semantics=("parallel",),
            vmem_limit_bytes=vmem_budget,
        ),
        cost_estimate=cost,
    )(*inputs)

    if compute_loss:
        pred_t, mae_p, mse_p = outs
    else:
        pred_t = outs

    pred = jnp.reshape(pred_t[:, :B] if masked else pred_t, (B, 1))
    if not compute_loss:
        return pred
    inv_n = 1.0 / B                      # compile-time: multiply, not divide
    mae = jnp.sum(mae_p) * inv_n
    mse = jnp.sum(mse_p) * inv_n
    return pred, mae, mse


# --------------------------- Parameter init ----------------------------------

def glorot_uniform(key, fan_sum, shape):
    limit = np.sqrt(6.0 / fan_sum)
    return jax.random.uniform(key, shape, jnp.float32, -limit, limit)


def init_params(key, input_size, hidden_size):
    k1, k2 = jax.random.split(key)
    # nn.Linear weight is [out, in]; the reference glorot limit uses out+in.
    # We store W1 transposed ([in, out]) and W2 as a [1, H] row for the kernel.
    w1 = jnp.transpose(
        glorot_uniform(k1, hidden_size + input_size,
                       (hidden_size, input_size)))                 # [D_in, H]
    w2_row = glorot_uniform(k2, 1 + hidden_size, (1, hidden_size))  # [1, H]
    b1 = jnp.zeros((1, hidden_size), jnp.float32)                   # zeroed
    b2 = jnp.zeros((1, 1), jnp.float32)
    return w1, b1, w2_row, b2


# ------------------------------- Main -----------------------------------------

if __name__ == "__main__":
    input_size = 32
    hidden_size = 32
    batch = 8

    key = jax.random.PRNGKey(0)
    kx, ky, kp, kx2, ky2 = jax.random.split(key, 5)

    x = jax.random.normal(kx, (batch, input_size), jnp.float32)
    y = jax.random.normal(ky, (batch, 1), jnp.float32)
    params = init_params(kp, input_size, hidden_size)
    w1, b1, w2_row, b2 = params

    def ref_fwd(xr, yr=None):
        h1 = jnp.maximum(xr @ w1 + b1, 0.0)
        pr = h1 @ w2_row.T + b2
        if yr is None:
            return pr
        return pr, jnp.mean(jnp.abs(pr - yr)), jnp.mean((pr - yr) ** 2)

    # Path without labels (pred only) and with labels (pred, mae, mse).
    pred = mlp_regression(x, params)
    pred2, mae, mse = mlp_regression(x, params, y)
    jax.block_until_ready((pred, pred2, mae, mse))

    pred_ref, mae_ref, mse_ref = ref_fwd(x, y)
    assert pred.shape == (batch, 1) and pred2.shape == (batch, 1)
    assert jnp.allclose(pred, pred_ref, atol=1e-5), "pred mismatch"
    assert jnp.allclose(pred2, pred_ref, atol=1e-5), "pred (loss path) mismatch"
    assert jnp.allclose(mae, mae_ref, atol=1e-5), "mae mismatch"
    assert jnp.allclose(mse, mse_ref, atol=1e-5), "mse mismatch"

    # Multi-block gridded path with a ragged tail: exercises the per-block
    # loss partials, the "parallel" batch axis and the valid-row mask.
    B2 = 300
    x2 = jax.random.normal(kx2, (B2, input_size), jnp.float32)
    y2 = jax.random.normal(ky2, (B2, 1), jnp.float32)
    pred3, mae3, mse3 = mlp_regression(x2, params, y2, max_rows_per_step=128)
    jax.block_until_ready((pred3, mae3, mse3))
    pred3_ref, mae3_ref, mse3_ref = ref_fwd(x2, y2)
    assert jnp.allclose(pred3, pred3_ref, atol=1e-4), "gridded pred mismatch"
    assert jnp.allclose(mae3, mae3_ref, atol=1e-4), "gridded mae mismatch"
    assert jnp.allclose(mse3, mse3_ref, atol=1e-4), "gridded mse mismatch"

    # bf16 fast path: producer-supplied bf16 x -> no wrapper-side cast/pad.
    pred_bf16 = mlp_regression(x.astype(jnp.bfloat16), params)
    jax.block_until_ready(pred_bf16)
    assert jnp.allclose(pred_bf16, pred_ref, atol=0.15, rtol=0.05), \
        "bf16 pred too far off"

    print("KERNEL_OK")
</pallas_src>

<mosaic_0001>
module attributes {stable_mosaic.version = 11 : i64} {
  func.func @_mlp_kernel(%arg0: i32, %arg1: memref<8x32xf32, #tpu.memory_space<vmem>>, %arg2: memref<32x32xf32, #tpu.memory_space<vmem>>, %arg3: memref<1x32xf32, #tpu.memory_space<vmem>>, %arg4: memref<1x32xf32, #tpu.memory_space<vmem>>, %arg5: memref<1x1xf32, #tpu.memory_space<vmem>>, %arg6: memref<1x8xf32, #tpu.memory_space<vmem>>) attributes {dimension_semantics = [#tpu.dimension_semantics<parallel>], iteration_bounds = array<i64: 1>, scalar_prefetch = 0 : i64, scratch_operands = 0 : i64, tpu.core_type = #tpu.core_type<tc>, window_params = [{transform_indices = @transform_0, window_bounds = array<i64: 8, 32>}, {pipeline_mode = #tpu.pipeline_mode<synchronous>, transform_indices = @transform_1, window_bounds = array<i64: 32, 32>}, {pipeline_mode = #tpu.pipeline_mode<synchronous>, transform_indices = @transform_2, window_bounds = array<i64: 1, 32>}, {pipeline_mode = #tpu.pipeline_mode<synchronous>, transform_indices = @transform_3, window_bounds = array<i64: 1, 32>}, {pipeline_mode = #tpu.pipeline_mode<synchronous>, transform_indices = @transform_4, window_bounds = array<i64: 1, 1>}, {transform_indices = @transform_5, window_bounds = array<i64: 1, 8>}]} {
    %c0 = arith.constant 0 : index
    %c0_0 = arith.constant 0 : index
    %0 = vector.load %arg1[%c0, %c0_0] : memref<8x32xf32, #tpu.memory_space<vmem>>, vector<8x32xf32>
    %c0_1 = arith.constant 0 : index
    %c0_2 = arith.constant 0 : index
    %1 = vector.load %arg2[%c0_1, %c0_2] : memref<32x32xf32, #tpu.memory_space<vmem>>, vector<32x32xf32>
    %cst = arith.constant dense<0.000000e+00> : vector<8x32xf32>
    %2 = tpu.matmul %0, %1, %cst {dimension_numbers = #tpu.dot_dimension_numbers<[1], [0], [0], [1], [0, 0, 1, 1], [], []>} : vector<8x32xf32>, vector<32x32xf32>, vector<8x32xf32> -> vector<8x32xf32>
    %c0_3 = arith.constant 0 : index
    %c0_4 = arith.constant 0 : index
    %3 = vector.load %arg3[%c0_3, %c0_4] : memref<1x32xf32, #tpu.memory_space<vmem>>, vector<1x32xf32>
    %4 = vector.broadcast %3 : vector<1x32xf32> to vector<8x32xf32>
    %5 = arith.addf %2, %4 : vector<8x32xf32>
    %cst_5 = arith.constant 0.000000e+00 : f32
    %6 = vector.broadcast %cst_5 : f32 to vector<8x32xf32>
    %7 = arith.maximumf %5, %6 : vector<8x32xf32>
    %c0_6 = arith.constant 0 : index
    %c0_7 = arith.constant 0 : index
    %8 = vector.load %arg4[%c0_6, %c0_7] : memref<1x32xf32, #tpu.memory_space<vmem>>, vector<1x32xf32>
    %cst_8 = arith.constant dense<0.000000e+00> : vector<1x8xf32>
    %9 = tpu.matmul %8, %7, %cst_8 {dimension_numbers = #tpu.dot_dimension_numbers<[1], [1], [0], [0], [0, 0, 1, 0], [], []>} : vector<1x32xf32>, vector<8x32xf32>, vector<1x8xf32> -> vector<1x8xf32>
    %c0_9 = arith.constant 0 : index
    %c0_10 = arith.constant 0 : index
    %10 = vector.load %arg5[%c0_9, %c0_10] : memref<1x1xf32, #tpu.memory_space<vmem>>, vector<1x1xf32>
    %11 = vector.broadcast %10 : vector<1x1xf32> to vector<1x8xf32>
    %12 = arith.addf %9, %11 : vector<1x8xf32>
    %c0_11 = arith.constant 0 : index
    %c0_12 = arith.constant 0 : index
    %13 = vector.load %arg6[%c0_11, %c0_12] : memref<1x8xf32, #tpu.memory_space<vmem>>, vector<1x8xf32>
    tpu.vector_store %arg6[%c0_11, %c0_12], %12 {strides = array<i32>} : memref<1x8xf32, #tpu.memory_space<vmem>>, vector<1x8xf32>,
    return
  }
  func.func @transform_0(%arg0: i32) -> (i32, i32) {
    %c0_i32 = arith.constant 0 : i32
    %c0_i32_0 = arith.constant 0 : i32
    return %arg0, %c0_i32 : i32, i32
  }
  func.func @transform_1(%arg0: i32) -> (i32, i32) {
    %c0_i32 = arith.constant 0 : i32
    %c0_i32_0 = arith.constant 0 : i32
    %c0_i32_1 = arith.constant 0 : i32
    return %c0_i32, %c0_i32_0 : i32, i32
  }
  func.func @transform_2(%arg0: i32) -> (i32, i32) {
    %c0_i32 = arith.constant 0 : i32
    %c0_i32_0 = arith.constant 0 : i32
    %c0_i32_1 = arith.constant 0 : i32
    return %c0_i32, %c0_i32_0 : i32, i32
  }
  func.func @transform_3(%arg0: i32) -> (i32, i32) {
    %c0_i32 = arith.constant 0 : i32
    %c0_i32_0 = arith.constant 0 : i32
    %c0_i32_1 = arith.constant 0 : i32
    return %c0_i32, %c0_i32_0 : i32, i32
  }
  func.func @transform_4(%arg0: i32) -> (i32, i32) {
    %c0_i32 = arith.constant 0 : i32
    %c0_i32_0 = arith.constant 0 : i32
    %c0_i32_1 = arith.constant 0 : i32
    return %c0_i32, %c0_i32_0 : i32, i32
  }
  func.func @transform_5(%arg0: i32) -> (i32, i32) {
    %c0_i32 = arith.constant 0 : i32
    %c0_i32_0 = arith.constant 0 : i32
    return %c0_i32, %arg0 : i32, i32
  }
}

</mosaic_0001>

<llo_original>
// kernel: tpu_custom_call.1
$region0: #{tpu_custom_call.1}
  #allocation0 [shape = 'u32[]', space=smem, size = 0x4, offset = 0x4, fixed_abs, tag = 'smem constant byte address 0x4 - core index']
  #allocation1 [shape = 'u32[144,128]{1,0:T(1,128)}', space=vmem, size = 0x12000, scoped, tag = 'internal scratch']
  #allocation2 [shape = 'f32[1,1]{1,0:T(1,128)S(1)}', space=vmem, size = 0x200, scoped, tag = 'scoped memory for tpu_custom_call.1']
  %s0 = inlined_call_operand.hbm [shape: f32[8,32], index: 0, kind: input, shape index: {}]
  %s1 = inlined_call_operand.hbm [shape: f32[32,32], index: 1, kind: input, shape index: {}]
  %s2 = inlined_call_operand.vmem [shape: f32[1,32], index: 2, kind: input, shape index: {}]
  %s3 = inlined_call_operand.vmem [shape: f32[1,32], index: 3, kind: input, shape index: {}]
  %s4 = inlined_call_operand.<no memory space> [shape: f32[1,1], index: 4, kind: input, shape index: {}]
  %s5 = inlined_call_operand.hbm [shape: f32[1,8], index: 5, kind: output, shape index: {}]
  %s6 = sld [smem:[#allocation0]]
  $region38: #{tpu_custom_call.1} parent=0
    _
  %s8 = ssub.s32 1, %s6
  %s9 = scalar_select 0, %s8, %s6
  %v10 = vstv %s4
  %11 = vst [vmem:[#allocation2] sm:$0x1] %v10
  $region1: #{tpu_custom_call.1} parent=0
    #allocation3 [shape = 'u8[4096]{0}', space=vmem, size = 0x1000, scoped, tag = 'input window, operand 0, single buffered']
    #allocation4 [shape = 's32[1]{0}', space=sflag, size = 0x4, scoped, tag = 'scoped memory for tpu_custom_call.1']
    #allocation5 [shape = 's32[1]{0}', space=sflag, size = 0x4, scoped, tag = 'scoped memory for tpu_custom_call.1']
    #allocation6 [shape = 'u8[16384]{0}', space=vmem, size = 0x4000, scoped, tag = 'input window, operand 1, single buffered']
    #allocation7 [shape = 's32[1]{0}', space=sflag, size = 0x4, scoped, tag = 'scoped memory for tpu_custom_call.1']
    #allocation8 [shape = 'u8[512]{0}', space=vmem, size = 0x400, scoped, tag = 'output window, operand 0, single buffered']
    %12 = vsyncpa [#allocation4], 0
    %13 = vsyncpa [#allocation7], 0
    %14 = vsyncpa [#allocation5], 0
    // Predicated region
    $region2: #{tpu_custom_call.1} parent=1 // pred_check
      _
    $region3: #{tpu_custom_call.1} parent=1 // pred_check_branch
      %16 = sbr.rel (0) target = $region5
    $region4: #{tpu_custom_call.1} parent=1 // pred_region
      %s18 = ssub.s32 128, 128
      %19 = vsyncadd [#allocation4], %s18
      %s21 = sshll.u32 [#allocation3], 4
      %s22 = int_to_ptr.vmem [resolvable:$true] %s21
      %24 = dma.hbm_to_vmem [thread:$0]  %s0, 128, %s22, [#allocation4]
    $region5: #{tpu_custom_call.1} parent=1 // pred_fallthru
      _
    // Predicated region
    $region6: #{tpu_custom_call.1} parent=1 // pred_check
      _
    $region7: #{tpu_custom_call.1} parent=1 // pred_check_branch
      %26 = sbr.rel (0) target = $region9
    $region8: #{tpu_custom_call.1} parent=1 // pred_region
      %s28 = ssub.s32 512, 512
      %29 = vsyncadd [#allocation7], %s28
      %s30 = sshll.u32 [#allocation6], 4
      %s31 = int_to_ptr.vmem [resolvable:$true] %s30
      %36 = dma.hbm_to_vmem [thread:$0]  %s1, 512, %s31, [#allocation7], 128, 128, 8
    $region9: #{tpu_custom_call.1} parent=1 // pred_fallthru
      _
    // Predicated region
    $region10: #{tpu_custom_call.1} parent=1 // pred_check
      _
    $region11: #{tpu_custom_call.1} parent=1 // pred_check_branch
      %38 = sbr.rel (0) target = $region13
    $region12: #{tpu_custom_call.1} parent=1 // pred_region
      _
    $region13: #{tpu_custom_call.1} parent=1 // pred_fallthru
      _
    // Predicated region
    $region14: #{tpu_custom_call.1} parent=1 // pred_check
      _
    $region15: #{tpu_custom_call.1} parent=1 // pred_check_branch
      %40 = sbr.rel (0) target = $region17
    $region16: #{tpu_custom_call.1} parent=1 // pred_region
      _
    $region17: #{tpu_custom_call.1} parent=1 // pred_fallthru
      _
    // Predicated region
    $region18: #{tpu_custom_call.1} parent=1 // pred_check
      _
    $region19: #{tpu_custom_call.1} parent=1 // pred_check_branch
      %42 = sbr.rel (0) target = $region21
    $region20: #{tpu_custom_call.1} parent=1 // pred_region
      _
    $region21: #{tpu_custom_call.1} parent=1 // pred_fallthru
      _
    // Predicated region
    $region22: #{tpu_custom_call.1} parent=1 // pred_check
      _
    $region23: #{tpu_custom_call.1} parent=1 // pred_check_branch
      %44 = sbr.rel (0) target = $region25
    $region24: #{tpu_custom_call.1} parent=1 // pred_region
      %45 = dma.done [#allocation4], 128
    $region25: #{tpu_custom_call.1} parent=1 // pred_fallthru
      _
    // Predicated region
    $region26: #{tpu_custom_call.1} parent=1 // pred_check
      _
    $region27: #{tpu_custom_call.1} parent=1 // pred_check_branch
      %47 = sbr.rel (0) target = $region29
    $region28: #{tpu_custom_call.1} parent=1 // pred_region
      %48 = dma.done [#allocation7], 512
    $region29: #{tpu_custom_call.1} parent=1 // pred_fallthru
      _
    %v49 = vld [vmem:[#allocation3] sm:$0xff]
    %v50 = vld [vmem:[#allocation6] sm:$0xff]
    %v51 = vld [vmem:[#allocation6 + $0x8] sm:$0xff]
    %v52 = vld [vmem:[#allocation6 + $0x10] sm:$0xff]
    %v53 = vld [vmem:[#allocation6 + $0x18] sm:$0xff]
    %v54 = vld [vmem:[%s2] sm:$0x1]
    %v56 = vlaneseq
    %v57 = vshrl.u32 %v56, 7
    %v58 = vsub.s32 0, %v57
    %v59 = vrot.slane %v54, %v58
    %vm61 = vcmask 261120
    %v63 = vsel %vm61, %v49, 0
    %65 = vmatprep.subr.mxu0 0.0
    %66 = vmatpush1.msra.mxu0 %v50
    %67 = vmatprep.subr.mxu0 0.0
    %68 = vmatpush1.msra.mxu0 %v51
    %69 = vmatprep.subr.mxu0 0.0
    %70 = vmatpush1.msra.mxu0 %v52
    %71 = vmatprep.subr.mxu0 0.0
    %72 = vmatpush1.msra.mxu0 %v53
    %73 = vmatprep.subr.mxu0 0.0
    %74 = vmatpush1.msra.mxu0 0.0
    %75 = vmatprep.subr.mxu0 0.0
    %76 = vmatpush1.msra.mxu0 0.0
    %77 = vmatprep.subr.mxu0 0.0
    %78 = vmatpush1.msra.mxu0 0.0
    %79 = vmatprep.subr.mxu0 0.0
    %80 = vmatpush1.msra.mxu0 0.0
    %81 = vmatprep.subr.mxu0 0.0
    %82 = vmatpush1.msra.mxu0 0.0
    %83 = vmatprep.subr.mxu0 0.0
    %84 = vmatpush1.msra.mxu0 0.0
    %85 = vmatprep.subr.mxu0 0.0
    %86 = vmatpush1.msra.mxu0 0.0
    %87 = vmatprep.subr.mxu0 0.0
    %88 = vmatpush1.msra.mxu0 0.0
    %89 = vmatprep.subr.mxu0 0.0
    %90 = vmatpush1.msra.mxu0 0.0
    %91 = vmatprep.subr.mxu0 0.0
    %92 = vmatpush1.msra.mxu0 0.0
    %93 = vmatprep.subr.mxu0 0.0
    %94 = vmatpush1.msra.mxu0 0.0
    %95 = vmatprep.subr.mxu0 0.0
    %96 = vmatpush1.msra.mxu0 0.0
    %97 = vmatprep.subr.mxu0 0.0
    %98 = vmatpush1.msra.mxu0 0.0
    %99 = vmatprep.subr.mxu0 0.0
    %100 = vmatpush1.msra.mxu0 0.0
    %101 = vmatprep.subr.mxu0 0.0
    %102 = vmatpush1.msra.mxu0 0.0
    %103 = vmatprep.subr.mxu0 0.0
    %104 = vmatpush1.msra.mxu0 0.0
    %105 = vmatprep.subr.mxu0 0.0
    %106 = vmatpush1.msra.mxu0 0.0
    %107 = vmatprep.subr.mxu0 0.0
    %108 = vmatpush1.msra.mxu0 0.0
    %109 = vmatprep.subr.mxu0 0.0
    %110 = vmatpush1.msra.mxu0 0.0
    %111 = vmatprep.subr.mxu0 0.0
    %112 = vmatpush1.msra.mxu0 0.0
    %113 = vmatprep.subr.mxu0 0.0
    %114 = vmatpush1.msra.mxu0 0.0
    %115 = vmatprep.subr.mxu0 0.0
    %116 = vmatpush1.msra.mxu0 0.0
    %117 = vmatprep.subr.mxu0 0.0
    %118 = vmatpush1.msra.mxu0 0.0
    %119 = vmatprep.subr.mxu0 0.0
    %120 = vmatpush1.msra.mxu0 0.0
    %121 = vmatprep.subr.mxu0 0.0
    %122 = vmatpush1.msra.mxu0 0.0
    %123 = vmatprep.subr.mxu0 0.0
    %124 = vmatpush1.msra.mxu0 0.0
    %125 = vmatprep.subr.mxu0 0.0
    %126 = vmatpush1.msra.mxu0 0.0
    %127 = vmatprep.subr.mxu0 0.0
    %128 = vmatpush1.msra.mxu0 0.0
    %129 = vmatprep.mubr.f32.mxu0 0.0
    %130 = vmatmul.mubr.f32.gmra.mrb[0].mxu0 %v63
    %v131 = vpop.f32.mrb[0].mxu0
    %v132 = vadd.f32 %v59, %v131
    %v133 = vpop.f32.mrb[0].mxu0
    %134 = vdwg.mxu0
    %v135 = vmax.f32 %v132, 0.0
    %v136 = vld [vmem:[%s3] sm:$0x1]
    %v137 = vld [vmem:[#allocation2] sm:$0x1]
    %139 = vset.pattern.permute.xlu0 0
    %140 = vperm.xlu0 %139, %v137
    %v141 = vpop.permute.xlu0 %140
    %v143 = vlaneseq
    %v144 = vshrl.u32 %v143, 7
    %v145 = vsub.s32 0, %v144
    %v146 = vrot.slane %v141, %v145
    %v148 = vsel %vm61, %v136, 0
    %v151 = vsel %vm61, %v135, 0
    %153 = vmatprep.subr.mxu0 0.0
    %154 = vmatpush1.xpose.msra.mxu0 %v151
    %155 = vmatprep.subr.mxu0 0.0
    %156 = vmatpush1.xpose.msra.mxu0 0.0
    %157 = vmatprep.subr.mxu0 0.0
    %158 = vmatpush1.xpose.msra.mxu0 0.0
    %159 = vmatprep.subr.mxu0 0.0
    %160 = vmatpush1.xpose.msra.mxu0 0.0
    %161 = vmatprep.subr.mxu0 0.0
    %162 = vmatpush1.xpose.msra.mxu0 0.0
    %163 = vmatprep.subr.mxu0 0.0
    %164 = vmatpush1.xpose.msra.mxu0 0.0
    %165 = vmatprep.subr.mxu0 0.0
    %166 = vmatpush1.xpose.msra.mxu0 0.0
    %167 = vmatprep.subr.mxu0 0.0
    %168 = vmatpush1.xpose.msra.mxu0 0.0
    %169 = vmatprep.subr.mxu0 0.0
    %170 = vmatpush1.xpose.msra.mxu0 0.0
    %171 = vmatprep.subr.mxu0 0.0
    %172 = vmatpush1.xpose.msra.mxu0 0.0
    %173 = vmatprep.subr.mxu0 0.0
    %174 = vmatpush1.xpose.msra.mxu0 0.0
    %175 = vmatprep.subr.mxu0 0.0
    %176 = vmatpush1.xpose.msra.mxu0 0.0
    %177 = vmatprep.subr.mxu0 0.0
    %178 = vmatpush1.xpose.msra.mxu0 0.0
    %179 = vmatprep.subr.mxu0 0.0
    %180 = vmatpush1.xpose.msra.mxu0 0.0
    %181 = vmatprep.subr.mxu0 0.0
    %182 = vmatpush1.xpose.msra.mxu0 0.0
    %183 = vmatprep.subr.mxu0 0.0
    %184 = vmatpush1.xpose.msra.mxu0 0.0
    %185 = vmatprep.subr.mxu0 0.0
    %186 = vmatpush1.xpose.msra.mxu0 0.0
    %187 = vmatprep.subr.mxu0 0.0
    %188 = vmatpush1.xpose.msra.mxu0 0.0
    %189 = vmatprep.subr.mxu0 0.0
    %190 = vmatpush1.xpose.msra.mxu0 0.0
    %191 = vmatprep.subr.mxu0 0.0
    %192 = vmatpush1.xpose.msra.mxu0 0.0
    %193 = vmatprep.subr.mxu0 0.0
    %194 = vmatpush1.xpose.msra.mxu0 0.0
    %195 = vmatprep.subr.mxu0 0.0
    %196 = vmatpush1.xpose.msra.mxu0 0.0
    %197 = vmatprep.subr.mxu0 0.0
    %198 = vmatpush1.xpose.msra.mxu0 0.0
    %199 = vmatprep.subr.mxu0 0.0
    %200 = vmatpush1.xpose.msra.mxu0 0.0
    %201 = vmatprep.subr.mxu0 0.0
    %202 = vmatpush1.xpose.msra.mxu0 0.0
    %203 = vmatprep.subr.mxu0 0.0
    %204 = vmatpush1.xpose.msra.mxu0 0.0
    %205 = vmatprep.subr.mxu0 0.0
    %206 = vmatpush1.xpose.msra.mxu0 0.0
    %207 = vmatprep.subr.mxu0 0.0
    %208 = vmatpush1.xpose.msra.mxu0 0.0
    %209 = vmatprep.subr.mxu0 0.0
    %210 = vmatpush1.xpose.msra.mxu0 0.0
    %211 = vmatprep.subr.mxu0 0.0
    %212 = vmatpush1.xpose.msra.mxu0 0.0
    %213 = vmatprep.subr.mxu0 0.0
    %214 = vmatpush1.xpose.msra.mxu0 0.0
    %215 = vmatprep.subr.mxu0 0.0
    %216 = vmatpush1.xpose.msra.mxu0 0.0
    %217 = vmatprep.mubr.f32.mxu0 0.0
    %218 = vmatmul.mubr.f32.gmra.mrb[0].mxu0 %v148
    %v219 = vpop.f32.mrb[0].mxu0
    %v220 = vadd.f32 %v146, %v219
    %v221 = vpop.f32.mrb[0].mxu0
    %222 = vdwg.mxu0
    %vm223 = vcmask 57344
    %224 = vst.msk [vmem:[#allocation8] sm:$0x1] %vm223, %v220
    // Predicated region
    $region30: #{tpu_custom_call.1} parent=1 // pred_check
      _
    $region31: #{tpu_custom_call.1} parent=1 // pred_check_branch
      %226 = sbr.rel (0) target = $region33
    $region32: #{tpu_custom_call.1} parent=1 // pred_region
      %s228 = ssub.s32 16, 16
      %229 = vsyncadd [#allocation5], %s228
      %s231 = sshll.u32 [#allocation8], 4
      %s232 = int_to_ptr.vmem [resolvable:$true] %s231
      %234 = dma.vmem_to_hbm [thread:$0]  %s232, 16, %s5, [#allocation5]
    $region33: #{tpu_custom_call.1} parent=1 // pred_fallthru
      _
    // Predicated region
    $region34: #{tpu_custom_call.1} parent=1 // pred_check
      _
    $region35: #{tpu_custom_call.1} parent=1 // pred_check_branch
      %236 = sbr.rel (0) target = $region37
    $region36: #{tpu_custom_call.1} parent=1 // pred_region
      %237 = dma.done [#allocation5], 16
    $region37: #{tpu_custom_call.1} parent=1 // pred_fallthru
      _
    %238 = vsyncpa [#allocation4], 1
    %239 = vsyncpa [#allocation7], 1
    %240 = vsyncpa [#allocation5], 1

</llo_original>
